<compile_context>
chip_gen: v6e
topology: v6e:2x2x1
jax: 0.10.0
libtpu: 0.0.40
codegen_flags: <defaults>
</compile_context>

<pallas_src>
import functools

import jax
import jax.numpy as jnp
from jax.experimental import pallas as pl
from jax.experimental.pallas import tpu as pltpu

_B_TILE_MAX = 1024  # per-step VMEM at 1024 rows, Op=128, L_out<=16 is ~8 MiB


def _round_up(x: int, m: int) -> int:
    return (x + m - 1) // m * m


def _cnn_kernel(x_ref, w_ref, b_ref, o_ref, *, l_out: int, op: int):
    # x_ref: (bt, LCp) bf16    w_ref: (LCp, l_out*op) bf16    b_ref: (1, op) f32
    # o_ref: (bt, op)
    # Single MXU matmul against the block-Toeplitz weight: column group t holds the
    # (pre-bias) conv output for time step t.
    y = jnp.dot(x_ref[...], w_ref[...], preferred_element_type=jnp.float32)

    # MaxPool1d over the full output length: running max over static, lane-aligned
    # 128-wide slices (no reshape -> no relayout copy; pure VPU work).
    m = y[:, 0:op]
    for t in range(1, l_out):
        m = jnp.maximum(m, y[:, t * op:(t + 1) * op])

    # relu(max_t(y_t) + b) == max_t(relu(y_t + b)) since ReLU is monotone, so the
    # bias add + ReLU happen once, after the pool (f32, v5e-safe epilogue).
    m = jnp.maximum(m + b_ref[...], 0.0)
    o_ref[...] = m.astype(o_ref.dtype)


def cnn_forward(x_ncl, w_ock, bias):
    """x_ncl: (B, C, L) like PyTorch Conv1d input. Returns (B, O) = maxpool(relu(conv1d))."""
    B, C, L = x_ncl.shape
    O, _, K = w_ock.shape
    L_out = L - K + 1
    assert L_out >= 1, "kernel_size must be <= max_word_length"

    Op = _round_up(O, 128)        # lane-dense output axis
    LC = C * L                    # contraction depth (= 128 for the char-CNN shapes)
    LCp = _round_up(LC, 128)

    # ---- activations: contiguous reshape only (no im2col materialized in HBM).
    x_flat = x_ncl.reshape(B, LC).astype(jnp.bfloat16)
    if LCp != LC:
        x_flat = jnp.pad(x_flat, ((0, 0), (0, LCp - LC)))

    # ---- block-Toeplitz weight: W_toe[c*L + l, t*Op + o] = w[o, c, l - t] (valid taps).
    l_idx = jnp.arange(L)[:, None]                 # (L, 1)
    t_idx = jnp.arange(L_out)[None, :]             # (1, L_out)
    k_idx = l_idx - t_idx                          # (L, L_out)
    valid = (k_idx >= 0) & (k_idx < K)
    k_cl = jnp.clip(k_idx, 0, K - 1)
    w_g = w_ock.astype(jnp.float32)[:, :, k_cl]    # (O, C, L, L_out)
    w_g = jnp.where(valid[None, None], w_g, 0.0)
    if Op != O:                                    # zero pad lanes (sliced off later)
        w_g = jnp.pad(w_g, ((0, Op - O), (0, 0), (0, 0), (0, 0)))
    w_toe = jnp.transpose(w_g, (1, 2, 3, 0)).reshape(LC, L_out * Op)
    if LCp != LC:
        w_toe = jnp.pad(w_toe, ((0, LCp - LC), (0, 0)))
    w_toe = w_toe.astype(jnp.bfloat16)

    b_flat = bias.astype(jnp.float32).reshape(1, O)
    if Op != O:
        b_flat = jnp.pad(b_flat, ((0, 0), (0, Op - O)))

    # ---- batch tiling: split B evenly (minimal tail padding), keep >=2 grid steps
    # ---- for moderate/large B so v7x's 2 TensorCores both get work.
    if B > _B_TILE_MAX:
        n_tiles = pl.cdiv(B, _B_TILE_MAX)
    elif B >= 256:
        n_tiles = 2
    else:
        n_tiles = 1
    b_tile = _round_up(pl.cdiv(B, n_tiles), 8)
    Bp = n_tiles * b_tile
    if Bp != B:
        x_flat = jnp.pad(x_flat, ((0, Bp - B), (0, 0)))

    out = pl.pallas_call(
        functools.partial(_cnn_kernel, l_out=L_out, op=Op),
        out_shape=jax.ShapeDtypeStruct((Bp, Op), x_ncl.dtype),
        grid=(n_tiles,),
        in_specs=[
            pl.BlockSpec((b_tile, LCp), lambda i: (i, 0)),
            # constant block index -> Toeplitz weight DMA'd once, stays resident
            pl.BlockSpec((LCp, L_out * Op), lambda i: (0, 0)),
            pl.BlockSpec((1, Op), lambda i: (0, 0)),
        ],
        out_specs=pl.BlockSpec((b_tile, Op), lambda i: (i, 0)),
        compiler_params=pltpu.CompilerParams(
            dimension_semantics=("parallel",)),
    )(x_flat, w_toe, b_flat)

    return out[:B, :O]


def _reference(x_ncl, w_ock, bias):
    """Pure-JAX f32 reference matching the PyTorch module."""
    B, C, L = x_ncl.shape
    O, _, K = w_ock.shape
    L_out = L - K + 1
    y = jnp.zeros((B, O, L_out), jnp.float32)
    for k in range(K):
        y = y + jnp.einsum("bct,oc->bot",
                           x_ncl[:, :, k:k + L_out].astype(jnp.float32),
                           w_ock[:, :, k].astype(jnp.float32))
    y = y + bias[None, :, None]
    y = jnp.maximum(y, 0.0)
    return jnp.max(y, axis=-1)   # (B, O): maxpool(L_out) + squeeze


if __name__ == "__main__":
    # Small shapes consistent with the module.
    batch = 2
    char_dimension = 8       # in_channels
    max_word_length = 16     # sequence length L
    out_channels = 32        # number of filters / word dim
    kernel_size = 5

    key = jax.random.PRNGKey(0)
    kx, kw, kb = jax.random.split(key, 3)

    x = jax.random.normal(kx, (batch, char_dimension, max_word_length),
                          dtype=jnp.float32)
    # PyTorch Conv1d weight shape: (out_channels, in_channels, kernel_size)
    w = jax.random.normal(kw, (out_channels, char_dimension, kernel_size),
                          dtype=jnp.float32) * 0.1
    b = jax.random.normal(kb, (out_channels,), dtype=jnp.float32) * 0.1

    fwd = jax.jit(cnn_forward)
    out = jax.block_until_ready(fwd(x, w, b))
    ref = jax.block_until_ready(_reference(x, w, b))

    assert out.shape == (batch, out_channels), out.shape
    # bf16 MXU inputs with f32 accumulation -> slightly looser tolerance vs f32 reference.
    assert jnp.allclose(out, ref, atol=2e-2, rtol=2e-2), \
        f"max abs err {jnp.max(jnp.abs(out - ref))}"

    print("KERNEL_OK")
</pallas_src>

<mosaic_0001>
module attributes {stable_mosaic.version = 11 : i64} {
  func.func @_cnn_kernel(%arg0: i32, %arg1: memref<8x128xbf16, #tpu.memory_space<vmem>>, %arg2: memref<128x1536xbf16, #tpu.memory_space<vmem>>, %arg3: memref<1x128xf32, #tpu.memory_space<vmem>>, %arg4: memref<8x128xf32, #tpu.memory_space<vmem>>) attributes {dimension_semantics = [#tpu.dimension_semantics<parallel>], iteration_bounds = array<i64: 1>, scalar_prefetch = 0 : i64, scratch_operands = 0 : i64, tpu.core_type = #tpu.core_type<tc>, window_params = [{transform_indices = @transform_0, window_bounds = array<i64: 8, 128>}, {pipeline_mode = #tpu.pipeline_mode<synchronous>, transform_indices = @transform_1, window_bounds = array<i64: 128, 1536>}, {pipeline_mode = #tpu.pipeline_mode<synchronous>, transform_indices = @transform_2, window_bounds = array<i64: 1, 128>}, {transform_indices = @transform_3, window_bounds = array<i64: 8, 128>}]} {
    %c0 = arith.constant 0 : index
    %c0_0 = arith.constant 0 : index
    %0 = vector.load %arg1[%c0, %c0_0] : memref<8x128xbf16, #tpu.memory_space<vmem>>, vector<8x128xbf16>
    %c0_1 = arith.constant 0 : index
    %c0_2 = arith.constant 0 : index
    %1 = vector.load %arg2[%c0_1, %c0_2] : memref<128x1536xbf16, #tpu.memory_space<vmem>>, vector<128x1536xbf16>
    %cst = arith.constant dense<0.000000e+00> : vector<8x1536xf32>
    %2 = tpu.matmul %0, %1, %cst {dimension_numbers = #tpu.dot_dimension_numbers<[1], [0], [0], [1], [0, 0, 1, 1], [], []>} : vector<8x128xbf16>, vector<128x1536xbf16>, vector<8x1536xf32> -> vector<8x1536xf32>
    %3 = vector.extract_strided_slice %2 {offsets = [0, 0], sizes = [8, 128], strides = [1, 1]} : vector<8x1536xf32> to vector<8x128xf32>
    %4 = vector.extract_strided_slice %2 {offsets = [0, 128], sizes = [8, 128], strides = [1, 1]} : vector<8x1536xf32> to vector<8x128xf32>
    %5 = arith.maximumf %3, %4 : vector<8x128xf32>
    %6 = vector.extract_strided_slice %2 {offsets = [0, 256], sizes = [8, 128], strides = [1, 1]} : vector<8x1536xf32> to vector<8x128xf32>
    %7 = arith.maximumf %5, %6 : vector<8x128xf32>
    %8 = vector.extract_strided_slice %2 {offsets = [0, 384], sizes = [8, 128], strides = [1, 1]} : vector<8x1536xf32> to vector<8x128xf32>
    %9 = arith.maximumf %7, %8 : vector<8x128xf32>
    %10 = vector.extract_strided_slice %2 {offsets = [0, 512], sizes = [8, 128], strides = [1, 1]} : vector<8x1536xf32> to vector<8x128xf32>
    %11 = arith.maximumf %9, %10 : vector<8x128xf32>
    %12 = vector.extract_strided_slice %2 {offsets = [0, 640], sizes = [8, 128], strides = [1, 1]} : vector<8x1536xf32> to vector<8x128xf32>
    %13 = arith.maximumf %11, %12 : vector<8x128xf32>
    %14 = vector.extract_strided_slice %2 {offsets = [0, 768], sizes = [8, 128], strides = [1, 1]} : vector<8x1536xf32> to vector<8x128xf32>
    %15 = arith.maximumf %13, %14 : vector<8x128xf32>
    %16 = vector.extract_strided_slice %2 {offsets = [0, 896], sizes = [8, 128], strides = [1, 1]} : vector<8x1536xf32> to vector<8x128xf32>
    %17 = arith.maximumf %15, %16 : vector<8x128xf32>
    %18 = vector.extract_strided_slice %2 {offsets = [0, 1024], sizes = [8, 128], strides = [1, 1]} : vector<8x1536xf32> to vector<8x128xf32>
    %19 = arith.maximumf %17, %18 : vector<8x128xf32>
    %20 = vector.extract_strided_slice %2 {offsets = [0, 1152], sizes = [8, 128], strides = [1, 1]} : vector<8x1536xf32> to vector<8x128xf32>
    %21 = arith.maximumf %19, %20 : vector<8x128xf32>
    %22 = vector.extract_strided_slice %2 {offsets = [0, 1280], sizes = [8, 128], strides = [1, 1]} : vector<8x1536xf32> to vector<8x128xf32>
    %23 = arith.maximumf %21, %22 : vector<8x128xf32>
    %24 = vector.extract_strided_slice %2 {offsets = [0, 1408], sizes = [8, 128], strides = [1, 1]} : vector<8x1536xf32> to vector<8x128xf32>
    %25 = arith.maximumf %23, %24 : vector<8x128xf32>
    %c0_3 = arith.constant 0 : index
    %c0_4 = arith.constant 0 : index
    %26 = vector.load %arg3[%c0_3, %c0_4] : memref<1x128xf32, #tpu.memory_space<vmem>>, vector<1x128xf32>
    %27 = vector.broadcast %26 : vector<1x128xf32> to vector<8x128xf32>
    %28 = arith.addf %25, %27 : vector<8x128xf32>
    %cst_5 = arith.constant 0.000000e+00 : f32
    %29 = vector.broadcast %cst_5 : f32 to vector<8x128xf32>
    %30 = arith.maximumf %28, %29 : vector<8x128xf32>
    %c0_6 = arith.constant 0 : index
    %c0_7 = arith.constant 0 : index
    %31 = vector.load %arg4[%c0_6, %c0_7] : memref<8x128xf32, #tpu.memory_space<vmem>>, vector<8x128xf32>
    tpu.vector_store %arg4[%c0_6, %c0_7], %30 {strides = array<i32>} : memref<8x128xf32, #tpu.memory_space<vmem>>, vector<8x128xf32>,
    return
  }
  func.func @transform_0(%arg0: i32) -> (i32, i32) {
    %c0_i32 = arith.constant 0 : i32
    %c0_i32_0 = arith.constant 0 : i32
    return %arg0, %c0_i32 : i32, i32
  }
  func.func @transform_1(%arg0: i32) -> (i32, i32) {
    %c0_i32 = arith.constant 0 : i32
    %c0_i32_0 = arith.constant 0 : i32
    %c0_i32_1 = arith.constant 0 : i32
    return %c0_i32, %c0_i32_0 : i32, i32
  }
  func.func @transform_2(%arg0: i32) -> (i32, i32) {
    %c0_i32 = arith.constant 0 : i32
    %c0_i32_0 = arith.constant 0 : i32
    %c0_i32_1 = arith.constant 0 : i32
    return %c0_i32, %c0_i32_0 : i32, i32
  }
  func.func @transform_3(%arg0: i32) -> (i32, i32) {
    %c0_i32 = arith.constant 0 : i32
    %c0_i32_0 = arith.constant 0 : i32
    return %arg0, %c0_i32 : i32, i32
  }
}

</mosaic_0001>

<llo_original>
// kernel: cnn_forward.1
$region0: #{cnn_forward.1}
  #allocation0 [shape = 'u32[]', space=smem, size = 0x4, offset = 0x4, fixed_abs, tag = 'smem constant byte address 0x4 - core index']
  #allocation1 [shape = 'u32[144,128]{1,0:T(1,128)}', space=vmem, size = 0x12000, scoped, tag = 'internal scratch']
  %s0 = inlined_call_operand.vmem [shape: bf16[8,128], index: 0, kind: input, shape index: {}]
  %s1 = inlined_call_operand.vmem [shape: bf16[128,1536], index: 1, kind: input, shape index: {}]
  %s2 = inlined_call_operand.vmem [shape: f32[1,128], index: 2, kind: input, shape index: {}]
  %s3 = inlined_call_operand.vmem [shape: f32[8,128], index: 3, kind: output, shape index: {}]
  %s4 = sld [smem:[#allocation0]]
  $region22: #{cnn_forward.1} parent=0
    _
  %s6 = ssub.s32 1, %s4
  %s7 = scalar_select 0, %s6, %s4
  // Predicated region
  $region2: #{cnn_forward.1} parent=0 // pred_check
    _
  $region3: #{cnn_forward.1} parent=0 // pred_check_branch
    %9 = sbr.rel (0) target = $region5
  $region4: #{cnn_forward.1} parent=0 // pred_region
    _
  $region5: #{cnn_forward.1} parent=0 // pred_fallthru
    _
  // Predicated region
  $region6: #{cnn_forward.1} parent=0 // pred_check
    _
  $region7: #{cnn_forward.1} parent=0 // pred_check_branch
    %11 = sbr.rel (0) target = $region9
  $region8: #{cnn_forward.1} parent=0 // pred_region
    _
  $region9: #{cnn_forward.1} parent=0 // pred_fallthru
    _
  // Predicated region
  $region10: #{cnn_forward.1} parent=0 // pred_check
    _
  $region11: #{cnn_forward.1} parent=0 // pred_check_branch
    %13 = sbr.rel (0) target = $region13
  $region12: #{cnn_forward.1} parent=0 // pred_region
    _
  $region13: #{cnn_forward.1} parent=0 // pred_fallthru
    _
  %v15 = vld [vmem:[%s0] sm:$0xf]
  %v16 = vld [vmem:[%s1] sm:$0xff]
  %v17 = vld [vmem:[%s1 + $0x8] sm:$0xff]
  %v18 = vld [vmem:[%s1 + $0x10] sm:$0xff]
  %v19 = vld [vmem:[%s1 + $0x18] sm:$0xff]
  %v20 = vld [vmem:[%s1 + $0x20] sm:$0xff]
  %v21 = vld [vmem:[%s1 + $0x28] sm:$0xff]
  %v22 = vld [vmem:[%s1 + $0x30] sm:$0xff]
  %v23 = vld [vmem:[%s1 + $0x38] sm:$0xff]
  %v24 = vld [vmem:[%s1 + $0x40] sm:$0xff]
  %v25 = vld [vmem:[%s1 + $0x48] sm:$0xff]
  %v26 = vld [vmem:[%s1 + $0x50] sm:$0xff]
  %v27 = vld [vmem:[%s1 + $0x58] sm:$0xff]
  %v28 = vld [vmem:[%s1 + $0x60] sm:$0xff]
  %v29 = vld [vmem:[%s1 + $0x68] sm:$0xff]
  %v30 = vld [vmem:[%s1 + $0x70] sm:$0xff]
  %v31 = vld [vmem:[%s1 + $0x78] sm:$0xff]
  %v32 = vld [vmem:[%s1 + $0x80] sm:$0xff]
  %v33 = vld [vmem:[%s1 + $0x88] sm:$0xff]
  %v34 = vld [vmem:[%s1 + $0x90] sm:$0xff]
  %v35 = vld [vmem:[%s1 + $0x98] sm:$0xff]
  %v36 = vld [vmem:[%s1 + $0xa0] sm:$0xff]
  %v37 = vld [vmem:[%s1 + $0xa8] sm:$0xff]
  %v38 = vld [vmem:[%s1 + $0xb0] sm:$0xff]
  %v39 = vld [vmem:[%s1 + $0xb8] sm:$0xff]
  %v40 = vld [vmem:[%s1 + $0xc0] sm:$0xff]
  %v41 = vld [vmem:[%s1 + $0xc8] sm:$0xff]
  %v42 = vld [vmem:[%s1 + $0xd0] sm:$0xff]
  %v43 = vld [vmem:[%s1 + $0xd8] sm:$0xff]
  %v44 = vld [vmem:[%s1 + $0xe0] sm:$0xff]
  %v45 = vld [vmem:[%s1 + $0xe8] sm:$0xff]
  %v46 = vld [vmem:[%s1 + $0xf0] sm:$0xff]
  %v47 = vld [vmem:[%s1 + $0xf8] sm:$0xff]
  %v48 = vld [vmem:[%s1 + $0x100] sm:$0xff]
  %v49 = vld [vmem:[%s1 + $0x108] sm:$0xff]
  %v50 = vld [vmem:[%s1 + $0x110] sm:$0xff]
  %v51 = vld [vmem:[%s1 + $0x118] sm:$0xff]
  %v52 = vld [vmem:[%s1 + $0x120] sm:$0xff]
  %v53 = vld [vmem:[%s1 + $0x128] sm:$0xff]
  %v54 = vld [vmem:[%s1 + $0x130] sm:$0xff]
  %v55 = vld [vmem:[%s1 + $0x138] sm:$0xff]
  %v56 = vld [vmem:[%s1 + $0x140] sm:$0xff]
  %v57 = vld [vmem:[%s1 + $0x148] sm:$0xff]
  %v58 = vld [vmem:[%s1 + $0x150] sm:$0xff]
  %v59 = vld [vmem:[%s1 + $0x158] sm:$0xff]
  %v60 = vld [vmem:[%s1 + $0x160] sm:$0xff]
  %v61 = vld [vmem:[%s1 + $0x168] sm:$0xff]
  %v62 = vld [vmem:[%s1 + $0x170] sm:$0xff]
  %v63 = vld [vmem:[%s1 + $0x178] sm:$0xff]
  %v64 = vld [vmem:[%s1 + $0x180] sm:$0xff]
  %v65 = vld [vmem:[%s1 + $0x188] sm:$0xff]
  %v66 = vld [vmem:[%s1 + $0x190] sm:$0xff]
  %v67 = vld [vmem:[%s1 + $0x198] sm:$0xff]
  %v68 = vld [vmem:[%s1 + $0x1a0] sm:$0xff]
  %v69 = vld [vmem:[%s1 + $0x1a8] sm:$0xff]
  %v70 = vld [vmem:[%s1 + $0x1b0] sm:$0xff]
  %v71 = vld [vmem:[%s1 + $0x1b8] sm:$0xff]
  %v72 = vld [vmem:[%s1 + $0x1c0] sm:$0xff]
  %v73 = vld [vmem:[%s1 + $0x1c8] sm:$0xff]
  %v74 = vld [vmem:[%s1 + $0x1d0] sm:$0xff]
  %v75 = vld [vmem:[%s1 + $0x1d8] sm:$0xff]
  %v76 = vld [vmem:[%s1 + $0x1e0] sm:$0xff]
  %v77 = vld [vmem:[%s1 + $0x1e8] sm:$0xff]
  %v78 = vld [vmem:[%s1 + $0x1f0] sm:$0xff]
  %v79 = vld [vmem:[%s1 + $0x1f8] sm:$0xff]
  %v80 = vld [vmem:[%s1 + $0x200] sm:$0xff]
  %v81 = vld [vmem:[%s1 + $0x208] sm:$0xff]
  %v82 = vld [vmem:[%s1 + $0x210] sm:$0xff]
  %v83 = vld [vmem:[%s1 + $0x218] sm:$0xff]
  %v84 = vld [vmem:[%s1 + $0x220] sm:$0xff]
  %v85 = vld [vmem:[%s1 + $0x228] sm:$0xff]
  %v86 = vld [vmem:[%s1 + $0x230] sm:$0xff]
  %v87 = vld [vmem:[%s1 + $0x238] sm:$0xff]
  %v88 = vld [vmem:[%s1 + $0x240] sm:$0xff]
  %v89 = vld [vmem:[%s1 + $0x248] sm:$0xff]
  %v90 = vld [vmem:[%s1 + $0x250] sm:$0xff]
  %v91 = vld [vmem:[%s1 + $0x258] sm:$0xff]
  %v92 = vld [vmem:[%s1 + $0x260] sm:$0xff]
  %v93 = vld [vmem:[%s1 + $0x268] sm:$0xff]
  %v94 = vld [vmem:[%s1 + $0x270] sm:$0xff]
  %v95 = vld [vmem:[%s1 + $0x278] sm:$0xff]
  %v96 = vld [vmem:[%s1 + $0x280] sm:$0xff]
  %v97 = vld [vmem:[%s1 + $0x288] sm:$0xff]
  %v98 = vld [vmem:[%s1 + $0x290] sm:$0xff]
  %v99 = vld [vmem:[%s1 + $0x298] sm:$0xff]
  %v100 = vld [vmem:[%s1 + $0x2a0] sm:$0xff]
  %v101 = vld [vmem:[%s1 + $0x2a8] sm:$0xff]
  %v102 = vld [vmem:[%s1 + $0x2b0] sm:$0xff]
  %v103 = vld [vmem:[%s1 + $0x2b8] sm:$0xff]
  %v104 = vld [vmem:[%s1 + $0x2c0] sm:$0xff]
  %v105 = vld [vmem:[%s1 + $0x2c8] sm:$0xff]
  %v106 = vld [vmem:[%s1 + $0x2d0] sm:$0xff]
  %v107 = vld [vmem:[%s1 + $0x2d8] sm:$0xff]
  %v108 = vld [vmem:[%s1 + $0x2e0] sm:$0xff]
  %v109 = vld [vmem:[%s1 + $0x2e8] sm:$0xff]
  %v110 = vld [vmem:[%s1 + $0x2f0] sm:$0xff]
  %v111 = vld [vmem:[%s1 + $0x2f8] sm:$0xff]
  %v208 = vunpack.c.l.b16 %v16
  %v209 = vunpack.c.h.b16 %v16
  %v210 = vunpack.c.l.b16 %v17
  %v211 = vunpack.c.h.b16 %v17
  %v212 = vunpack.c.l.b16 %v18
  %v213 = vunpack.c.h.b16 %v18
  %v214 = vunpack.c.l.b16 %v19
  %v215 = vunpack.c.h.b16 %v19
  %v216 = vunpack.c.l.b16 %v20
  %v217 = vunpack.c.h.b16 %v20
  %v218 = vunpack.c.l.b16 %v21
  %v219 = vunpack.c.h.b16 %v21
  %v220 = vunpack.c.l.b16 %v22
  %v221 = vunpack.c.h.b16 %v22
  %v222 = vunpack.c.l.b16 %v23
  %v223 = vunpack.c.h.b16 %v23
  %v224 = vunpack.c.l.b16 %v24
  %v225 = vunpack.c.h.b16 %v24
  %v226 = vunpack.c.l.b16 %v25
  %v227 = vunpack.c.h.b16 %v25
  %v228 = vunpack.c.l.b16 %v26
  %v229 = vunpack.c.h.b16 %v26
  %v230 = vunpack.c.l.b16 %v27
  %v231 = vunpack.c.h.b16 %v27
  %v232 = vunpack.c.l.b16 %v28
  %v233 = vunpack.c.h.b16 %v28
  %v234 = vunpack.c.l.b16 %v29
  %v235 = vunpack.c.h.b16 %v29
  %v236 = vunpack.c.l.b16 %v30
  %v237 = vunpack.c.h.b16 %v30
  %v238 = vunpack.c.l.b16 %v31
  %v239 = vunpack.c.h.b16 %v31
  %v240 = vunpack.c.l.b16 %v32
  %v241 = vunpack.c.h.b16 %v32
  %v242 = vunpack.c.l.b16 %v33
  %v243 = vunpack.c.h.b16 %v33
  %v244 = vunpack.c.l.b16 %v34
  %v245 = vunpack.c.h.b16 %v34
  %v246 = vunpack.c.l.b16 %v35
  %v247 = vunpack.c.h.b16 %v35
  %v248 = vunpack.c.l.b16 %v36
  %v249 = vunpack.c.h.b16 %v36
  %v250 = vunpack.c.l.b16 %v37
  %v251 = vunpack.c.h.b16 %v37
  %v252 = vunpack.c.l.b16 %v38
  %v253 = vunpack.c.h.b16 %v38
  %v254 = vunpack.c.l.b16 %v39
  %v255 = vunpack.c.h.b16 %v39
  %v256 = vunpack.c.l.b16 %v40
  %v257 = vunpack.c.h.b16 %v40
  %v258 = vunpack.c.l.b16 %v41
  %v259 = vunpack.c.h.b16 %v41
  %v260 = vunpack.c.l.b16 %v42
  %v261 = vunpack.c.h.b16 %v42
  %v262 = vunpack.c.l.b16 %v43
  %v263 = vunpack.c.h.b16 %v43
  %v264 = vunpack.c.l.b16 %v44
  %v265 = vunpack.c.h.b16 %v44
  %v266 = vunpack.c.l.b16 %v45
  %v267 = vunpack.c.h.b16 %v45
  %v268 = vunpack.c.l.b16 %v46
  %v269 = vunpack.c.h.b16 %v46
  %v270 = vunpack.c.l.b16 %v47
  %v271 = vunpack.c.h.b16 %v47
  %v272 = vunpack.c.l.b16 %v48
  %v273 = vunpack.c.h.b16 %v48
  %v274 = vunpack.c.l.b16 %v49
  %v275 = vunpack.c.h.b16 %v49
  %v276 = vunpack.c.l.b16 %v50
  %v277 = vunpack.c.h.b16 %v50
  %v278 = vunpack.c.l.b16 %v51
  %v279 = vunpack.c.h.b16 %v51
  %v280 = vunpack.c.l.b16 %v52
  %v281 = vunpack.c.h.b16 %v52
  %v282 = vunpack.c.l.b16 %v53
  %v283 = vunpack.c.h.b16 %v53
  %v284 = vunpack.c.l.b16 %v54
  %v285 = vunpack.c.h.b16 %v54
  %v286 = vunpack.c.l.b16 %v55
  %v287 = vunpack.c.h.b16 %v55
  %v288 = vunpack.c.l.b16 %v56
  %v289 = vunpack.c.h.b16 %v56
  %v290 = vunpack.c.l.b16 %v57
  %v291 = vunpack.c.h.b16 %v57
  %v292 = vunpack.c.l.b16 %v58
  %v293 = vunpack.c.h.b16 %v58
  %v294 = vunpack.c.l.b16 %v59
  %v295 = vunpack.c.h.b16 %v59
  %v296 = vunpack.c.l.b16 %v60
  %v297 = vunpack.c.h.b16 %v60
  %v298 = vunpack.c.l.b16 %v61
  %v299 = vunpack.c.h.b16 %v61
  %v300 = vunpack.c.l.b16 %v62
  %v301 = vunpack.c.h.b16 %v62
  %v302 = vunpack.c.l.b16 %v63
  %v303 = vunpack.c.h.b16 %v63
  %v304 = vunpack.c.l.b16 %v64
  %v305 = vunpack.c.h.b16 %v64
  %v306 = vunpack.c.l.b16 %v65
  %v307 = vunpack.c.h.b16 %v65
  %v308 = vunpack.c.l.b16 %v66
  %v309 = vunpack.c.h.b16 %v66
  %v310 = vunpack.c.l.b16 %v67
  %v311 = vunpack.c.h.b16 %v67
  %v312 = vunpack.c.l.b16 %v68
  %v313 = vunpack.c.h.b16 %v68
  %v314 = vunpack.c.l.b16 %v69
  %v315 = vunpack.c.h.b16 %v69
  %v316 = vunpack.c.l.b16 %v70
  %v317 = vunpack.c.h.b16 %v70
  %v318 = vunpack.c.l.b16 %v71
  %v319 = vunpack.c.h.b16 %v71
  %v320 = vunpack.c.l.b16 %v72
  %v321 = vunpack.c.h.b16 %v72
  %v322 = vunpack.c.l.b16 %v73
  %v323 = vunpack.c.h.b16 %v73
  %v324 = vunpack.c.l.b16 %v74
  %v325 = vunpack.c.h.b16 %v74
  %v326 = vunpack.c.l.b16 %v75
  %v327 = vunpack.c.h.b16 %v75
  %v328 = vunpack.c.l.b16 %v76
  %v329 = vunpack.c.h.b16 %v76
  %v330 = vunpack.c.l.b16 %v77
  %v331 = vunpack.c.h.b16 %v77
  %v332 = vunpack.c.l.b16 %v78
  %v333 = vunpack.c.h.b16 %v78
  %v334 = vunpack.c.l.b16 %v79
  %v335 = vunpack.c.h.b16 %v79
  %v336 = vunpack.c.l.b16 %v80
  %v337 = vunpack.c.h.b16 %v80
  %v338 = vunpack.c.l.b16 %v81
  %v339 = vunpack.c.h.b16 %v81
  %v340 = vunpack.c.l.b16 %v82
  %v341 = vunpack.c.h.b16 %v82
  %v342 = vunpack.c.l.b16 %v83
  %v343 = vunpack.c.h.b16 %v83
  %v344 = vunpack.c.l.b16 %v84
  %v345 = vunpack.c.h.b16 %v84
  %v346 = vunpack.c.l.b16 %v85
  %v347 = vunpack.c.h.b16 %v85
  %v348 = vunpack.c.l.b16 %v86
  %v349 = vunpack.c.h.b16 %v86
  %v350 = vunpack.c.l.b16 %v87
  %v351 = vunpack.c.h.b16 %v87
  %v352 = vunpack.c.l.b16 %v88
  %v353 = vunpack.c.h.b16 %v88
  %v354 = vunpack.c.l.b16 %v89
  %v355 = vunpack.c.h.b16 %v89
  %v356 = vunpack.c.l.b16 %v90
  %v357 = vunpack.c.h.b16 %v90
  %v358 = vunpack.c.l.b16 %v91
  %v359 = vunpack.c.h.b16 %v91
  %v360 = vunpack.c.l.b16 %v92
  %v361 = vunpack.c.h.b16 %v92
  %v362 = vunpack.c.l.b16 %v93
  %v363 = vunpack.c.h.b16 %v93
  %v364 = vunpack.c.l.b16 %v94
  %v365 = vunpack.c.h.b16 %v94
  %v366 = vunpack.c.l.b16 %v95
  %v367 = vunpack.c.h.b16 %v95
  %v368 = vunpack.c.l.b16 %v96
  %v369 = vunpack.c.h.b16 %v96
  %v370 = vunpack.c.l.b16 %v97
  %v371 = vunpack.c.h.b16 %v97
  %v372 = vunpack.c.l.b16 %v98
  %v373 = vunpack.c.h.b16 %v98
  %v374 = vunpack.c.l.b16 %v99
  %v375 = vunpack.c.h.b16 %v99
  %v376 = vunpack.c.l.b16 %v100
  %v377 = vunpack.c.h.b16 %v100
  %v378 = vunpack.c.l.b16 %v101
  %v379 = vunpack.c.h.b16 %v101
  %v380 = vunpack.c.l.b16 %v102
  %v381 = vunpack.c.h.b16 %v102
  %v382 = vunpack.c.l.b16 %v103
  %v383 = vunpack.c.h.b16 %v103
  %v384 = vunpack.c.l.b16 %v104
  %v385 = vunpack.c.h.b16 %v104
  %v386 = vunpack.c.l.b16 %v105
  %v387 = vunpack.c.h.b16 %v105
  %v388 = vunpack.c.l.b16 %v106
  %v389 = vunpack.c.h.b16 %v106
  %v390 = vunpack.c.l.b16 %v107
  %v391 = vunpack.c.h.b16 %v107
  %v392 = vunpack.c.l.b16 %v108
  %v393 = vunpack.c.h.b16 %v108
  %v394 = vunpack.c.l.b16 %v109
  %v395 = vunpack.c.h.b16 %v109
  %v396 = vunpack.c.l.b16 %v110
  %v397 = vunpack.c.h.b16 %v110
  %v398 = vunpack.c.l.b16 %v111
  %v399 = vunpack.c.h.b16 %v111
  %v400 = vpack.c.b16 %v220, %v208
  %v401 = vpack.c.b16 %v221, %v209
  %v402 = vpack.c.b16 %v222, %v210
  %v403 = vpack.c.b16 %v223, %v211
  %v404 = vpack.c.b16 %v224, %v212
  %v405 = vpack.c.b16 %v225, %v213
  %v406 = vpack.c.b16 %v226, %v214
  %v407 = vpack.c.b16 %v227, %v215
  %v408 = vpack.c.b16 %v228, %v216
  %v409 = vpack.c.b16 %v229, %v217
  %v410 = vpack.c.b16 %v230, %v218
  %v411 = vpack.c.b16 %v231, %v219
  %v412 = vpack.c.b16 %v244, %v232
  %v413 = vpack.c.b16 %v245, %v233
  %v414 = vpack.c.b16 %v246, %v234
  %v415 = vpack.c.b16 %v247, %v235
  %v416 = vpack.c.b16 %v248, %v236
  %v417 = vpack.c.b16 %v249, %v237
  %v418 = vpack.c.b16 %v250, %v238
  %v419 = vpack.c.b16 %v251, %v239
  %v420 = vpack.c.b16 %v252, %v240
  %v421 = vpack.c.b16 %v253, %v241
  %v422 = vpack.c.b16 %v254, %v242
  %v423 = vpack.c.b16 %v255, %v243
  %v424 = vpack.c.b16 %v268, %v256
  %v425 = vpack.c.b16 %v269, %v257
  %v426 = vpack.c.b16 %v270, %v258
  %v427 = vpack.c.b16 %v271, %v259
  %v428 = vpack.c.b16 %v272, %v260
  %v429 = vpack.c.b16 %v273, %v261
  %v430 = vpack.c.b16 %v274, %v262
  %v431 = vpack.c.b16 %v275, %v263
  %v432 = vpack.c.b16 %v276, %v264
  %v433 = vpack.c.b16 %v277, %v265
  %v434 = vpack.c.b16 %v278, %v266
  %v435 = vpack.c.b16 %v279, %v267
  %v436 = vpack.c.b16 %v292, %v280
  %v437 = vpack.c.b16 %v293, %v281
  %v438 = vpack.c.b16 %v294, %v282
  %v439 = vpack.c.b16 %v295, %v283
  %v440 = vpack.c.b16 %v296, %v284
  %v441 = vpack.c.b16 %v297, %v285
  %v442 = vpack.c.b16 %v298, %v286
  %v443 = vpack.c.b16 %v299, %v287
  %v444 = vpack.c.b16 %v300, %v288
  %v445 = vpack.c.b16 %v301, %v289
  %v446 = vpack.c.b16 %v302, %v290
  %v447 = vpack.c.b16 %v303, %v291
  %v448 = vpack.c.b16 %v316, %v304
  %v449 = vpack.c.b16 %v317, %v305
  %v450 = vpack.c.b16 %v318, %v306
  %v451 = vpack.c.b16 %v319, %v307
  %v452 = vpack.c.b16 %v320, %v308
  %v453 = vpack.c.b16 %v321, %v309
  %v454 = vpack.c.b16 %v322, %v310
  %v455 = vpack.c.b16 %v323, %v311
  %v456 = vpack.c.b16 %v324, %v312
  %v457 = vpack.c.b16 %v325, %v313
  %v458 = vpack.c.b16 %v326, %v314
  %v459 = vpack.c.b16 %v327, %v315
  %v460 = vpack.c.b16 %v340, %v328
  %v461 = vpack.c.b16 %v341, %v329
  %v462 = vpack.c.b16 %v342, %v330
  %v463 = vpack.c.b16 %v343, %v331
  %v464 = vpack.c.b16 %v344, %v332
  %v465 = vpack.c.b16 %v345, %v333
  %v466 = vpack.c.b16 %v346, %v334
  %v467 = vpack.c.b16 %v347, %v335
  %v468 = vpack.c.b16 %v348, %v336
  %v469 = vpack.c.b16 %v349, %v337
  %v470 = vpack.c.b16 %v350, %v338
  %v471 = vpack.c.b16 %v351, %v339
  %v472 = vpack.c.b16 %v364, %v352
  %v473 = vpack.c.b16 %v365, %v353
  %v474 = vpack.c.b16 %v366, %v354
  %v475 = vpack.c.b16 %v367, %v355
  %v476 = vpack.c.b16 %v368, %v356
  %v477 = vpack.c.b16 %v369, %v357
  %v478 = vpack.c.b16 %v370, %v358
  %v479 = vpack.c.b16 %v371, %v359
  %v480 = vpack.c.b16 %v372, %v360
  %v481 = vpack.c.b16 %v373, %v361
  %v482 = vpack.c.b16 %v374, %v362
  %v483 = vpack.c.b16 %v375, %v363
  %v484 = vpack.c.b16 %v388, %v376
  %v485 = vpack.c.b16 %v389, %v377
  %v486 = vpack.c.b16 %v390, %v378
  %v487 = vpack.c.b16 %v391, %v379
  %v488 = vpack.c.b16 %v392, %v380
  %v489 = vpack.c.b16 %v393, %v381
  %v490 = vpack.c.b16 %v394, %v382
  %v491 = vpack.c.b16 %v395, %v383
  %v492 = vpack.c.b16 %v396, %v384
  %v493 = vpack.c.b16 %v397, %v385
  %v494 = vpack.c.b16 %v398, %v386
  %v495 = vpack.c.b16 %v399, %v387
  %592 = vmatprep.subr.bf16.mxu0 %v485
  %593 = vmatpush1.bf16.msra.mxu0 %v484
  %594 = vmatprep.subr.bf16.mxu0 %v473
  %595 = vmatpush1.bf16.msra.mxu0 %v472
  %596 = vmatprep.subr.bf16.mxu0 %v461
  %597 = vmatpush1.bf16.msra.mxu0 %v460
  %598 = vmatprep.subr.bf16.mxu0 %v449
  %599 = vmatpush1.bf16.msra.mxu0 %v448
  %600 = vmatprep.subr.bf16.mxu0 %v437
  %601 = vmatpush1.bf16.msra.mxu0 %v436
  %602 = vmatprep.subr.bf16.mxu0 %v425
  %603 = vmatpush1.bf16.msra.mxu0 %v424
  %604 = vmatprep.subr.bf16.mxu0 %v413
  %605 = vmatpush1.bf16.msra.mxu0 %v412
  %606 = vmatprep.subr.bf16.mxu0 %v401
  %607 = vmatpush1.bf16.msra.mxu0 %v400
  %608 = vmatprep.subr.bf16.mxu0 0
  %609 = vmatpush2.bf16.msra.mxu0 0
  %610 = vmatprep.subr.bf16.mxu0 0
  %611 = vmatpush2.bf16.msra.mxu0 0
  %612 = vmatprep.subr.bf16.mxu0 0
  %613 = vmatpush2.bf16.msra.mxu0 0
  %614 = vmatprep.subr.bf16.mxu0 0
  %615 = vmatpush2.bf16.msra.mxu0 0
  %616 = vmatprep.subr.bf16.mxu0 0
  %617 = vmatpush2.bf16.msra.mxu0 0
  %618 = vmatprep.subr.bf16.mxu0 0
  %619 = vmatpush2.bf16.msra.mxu0 0
  %620 = vmatprep.subr.bf16.mxu0 0
  %621 = vmatpush2.bf16.msra.mxu0 0
  %622 = vmatprep.subr.bf16.mxu0 0
  %623 = vmatpush2.bf16.msra.mxu0 0
  %624 = vmatprep.mubr.bf16.mxu0 0
  %625 = vmatmul.mubr.bf16.gmra.mxu0 %v15
  %v626 = vpop.f32.mrf.mxu0
  %v627 = vadd.f32 0.0, %v626
  %v628 = vpop.f32.mrf.mxu0
  %v629 = vadd.f32 0.0, %v628
  %v630 = vpop.f32.mrf.mxu0
  %v631 = vpop.f32.mrf.mxu0
  %632 = vdwg.mxu0
  %633 = vmatprep.subr.bf16.mxu0 %v487
  %634 = vmatpush1.bf16.msra.mxu0 %v486
  %635 = vmatprep.subr.bf16.mxu0 %v475
  %636 = vmatpush1.bf16.msra.mxu0 %v474
  %637 = vmatprep.subr.bf16.mxu0 %v463
  %638 = vmatpush1.bf16.msra.mxu0 %v462
  %639 = vmatprep.subr.bf16.mxu0 %v451
  %640 = vmatpush1.bf16.msra.mxu0 %v450
  %641 = vmatprep.subr.bf16.mxu0 %v439
  %642 = vmatpush1.bf16.msra.mxu0 %v438
  %643 = vmatprep.subr.bf16.mxu0 %v427
  %644 = vmatpush1.bf16.msra.mxu0 %v426
  %645 = vmatprep.subr.bf16.mxu0 %v415
  %646 = vmatpush1.bf16.msra.mxu0 %v414
  %647 = vmatprep.subr.bf16.mxu0 %v403
  %648 = vmatpush1.bf16.msra.mxu0 %v402
  %649 = vmatprep.subr.bf16.mxu0 0
  %650 = vmatpush2.bf16.msra.mxu0 0
  %651 = vmatprep.subr.bf16.mxu0 0
  %652 = vmatpush2.bf16.msra.mxu0 0
  %653 = vmatprep.subr.bf16.mxu0 0
  %654 = vmatpush2.bf16.msra.mxu0 0
  %655 = vmatprep.subr.bf16.mxu0 0
  %656 = vmatpush2.bf16.msra.mxu0 0
  %657 = vmatprep.subr.bf16.mxu0 0
  %658 = vmatpush2.bf16.msra.mxu0 0
  %659 = vmatprep.subr.bf16.mxu0 0
  %660 = vmatpush2.bf16.msra.mxu0 0
  %661 = vmatprep.subr.bf16.mxu0 0
  %662 = vmatpush2.bf16.msra.mxu0 0
  %663 = vmatprep.subr.bf16.mxu0 0
  %664 = vmatpush2.bf16.msra.mxu0 0
  %665 = vmatprep.mubr.bf16.mxu0 0
  %666 = vmatmul.mubr.bf16.gmra.mxu0 %v15
  %v667 = vpop.f32.mrf.mxu0
  %v668 = vadd.f32 0.0, %v667
  %v669 = vpop.f32.mrf.mxu0
  %v670 = vadd.f32 0.0, %v669
  %v671 = vpop.f32.mrf.mxu0
  %v672 = vpop.f32.mrf.mxu0
  %673 = vdwg.mxu0
  %674 = vmatprep.subr.bf16.mxu0 %v489
  %675 = vmatpush1.bf16.msra.mxu0 %v488
  %676 = vmatprep.subr.bf16.mxu0 %v477
  %677 = vmatpush1.bf16.msra.mxu0 %v476
  %678 = vmatprep.subr.bf16.mxu0 %v465
  %679 = vmatpush1.bf16.msra.mxu0 %v464
  %680 = vmatprep.subr.bf16.mxu0 %v453
  %681 = vmatpush1.bf16.msra.mxu0 %v452
  %682 = vmatprep.subr.bf16.mxu0 %v441
  %683 = vmatpush1.bf16.msra.mxu0 %v440
  %684 = vmatprep.subr.bf16.mxu0 %v429
  %685 = vmatpush1.bf16.msra.mxu0 %v428
  %686 = vmatprep.subr.bf16.mxu0 %v417
  %687 = vmatpush1.bf16.msra.mxu0 %v416
  %688 = vmatprep.subr.bf16.mxu0 %v405
  %689 = vmatpush1.bf16.msra.mxu0 %v404
  %690 = vmatprep.subr.bf16.mxu0 0
  %691 = vmatpush2.bf16.msra.mxu0 0
  %692 = vmatprep.subr.bf16.mxu0 0
  %693 = vmatpush2.bf16.msra.mxu0 0
  %694 = vmatprep.subr.bf16.mxu0 0
  %695 = vmatpush2.bf16.msra.mxu0 0
  %696 = vmatprep.subr.bf16.mxu0 0
  %697 = vmatpush2.bf16.msra.mxu0 0
  %698 = vmatprep.subr.bf16.mxu0 0
  %699 = vmatpush2.bf16.msra.mxu0 0
  %700 = vmatprep.subr.bf16.mxu0 0
  %701 = vmatpush2.bf16.msra.mxu0 0
  %702 = vmatprep.subr.bf16.mxu0 0
  %703 = vmatpush2.bf16.msra.mxu0 0
  %704 = vmatprep.subr.bf16.mxu0 0
  %705 = vmatpush2.bf16.msra.mxu0 0
  %706 = vmatprep.mubr.bf16.mxu0 0
  %707 = vmatmul.mubr.bf16.gmra.mxu0 %v15
  %v708 = vpop.f32.mrf.mxu0
  %v709 = vadd.f32 0.0, %v708
  %v710 = vpop.f32.mrf.mxu0
  %v711 = vadd.f32 0.0, %v710
  %v712 = vpop.f32.mrf.mxu0
  %v713 = vpop.f32.mrf.mxu0
  %714 = vdwg.mxu0
  %715 = vmatprep.subr.bf16.mxu0 %v491
  %716 = vmatpush1.bf16.msra.mxu0 %v490
  %717 = vmatprep.subr.bf16.mxu0 %v479
  %718 = vmatpush1.bf16.msra.mxu0 %v478
  %719 = vmatprep.subr.bf16.mxu0 %v467
  %720 = vmatpush1.bf16.msra.mxu0 %v466
  %721 = vmatprep.subr.bf16.mxu0 %v455
  %722 = vmatpush1.bf16.msra.mxu0 %v454
  %723 = vmatprep.subr.bf16.mxu0 %v443
  %724 = vmatpush1.bf16.msra.mxu0 %v442
  %725 = vmatprep.subr.bf16.mxu0 %v431
  %726 = vmatpush1.bf16.msra.mxu0 %v430
  %727 = vmatprep.subr.bf16.mxu0 %v419
  %728 = vmatpush1.bf16.msra.mxu0 %v418
  %729 = vmatprep.subr.bf16.mxu0 %v407
  %730 = vmatpush1.bf16.msra.mxu0 %v406
  %731 = vmatprep.subr.bf16.mxu0 0
  %732 = vmatpush2.bf16.msra.mxu0 0
  %733 = vmatprep.subr.bf16.mxu0 0
  %734 = vmatpush2.bf16.msra.mxu0 0
  %735 = vmatprep.subr.bf16.mxu0 0
  %736 = vmatpush2.bf16.msra.mxu0 0
  %737 = vmatprep.subr.bf16.mxu0 0
  %738 = vmatpush2.bf16.msra.mxu0 0
  %739 = vmatprep.subr.bf16.mxu0 0
  %740 = vmatpush2.bf16.msra.mxu0 0
  %741 = vmatprep.subr.bf16.mxu0 0
  %742 = vmatpush2.bf16.msra.mxu0 0
  %743 = vmatprep.subr.bf16.mxu0 0
  %744 = vmatpush2.bf16.msra.mxu0 0
  %745 = vmatprep.subr.bf16.mxu0 0
  %746 = vmatpush2.bf16.msra.mxu0 0
  %747 = vmatprep.mubr.bf16.mxu0 0
  %748 = vmatmul.mubr.bf16.gmra.mxu0 %v15
  %v749 = vpop.f32.mrf.mxu0
  %v750 = vadd.f32 0.0, %v749
  %v751 = vpop.f32.mrf.mxu0
  %v752 = vadd.f32 0.0, %v751
  %v753 = vpop.f32.mrf.mxu0
  %v754 = vpop.f32.mrf.mxu0
  %755 = vdwg.mxu0
  %756 = vmatprep.subr.bf16.mxu0 %v493
  %757 = vmatpush1.bf16.msra.mxu0 %v492
  %758 = vmatprep.subr.bf16.mxu0 %v481
  %759 = vmatpush1.bf16.msra.mxu0 %v480
  %760 = vmatprep.subr.bf16.mxu0 %v469
  %761 = vmatpush1.bf16.msra.mxu0 %v468
  %762 = vmatprep.subr.bf16.mxu0 %v457
  %763 = vmatpush1.bf16.msra.mxu0 %v456
  %764 = vmatprep.subr.bf16.mxu0 %v445
  %765 = vmatpush1.bf16.msra.mxu0 %v444
  %766 = vmatprep.subr.bf16.mxu0 %v433
  %767 = vmatpush1.bf16.msra.mxu0 %v432
  %768 = vmatprep.subr.bf16.mxu0 %v421
  %769 = vmatpush1.bf16.msra.mxu0 %v420
  %770 = vmatprep.subr.bf16.mxu0 %v409
  %771 = vmatpush1.bf16.msra.mxu0 %v408
  %772 = vmatprep.subr.bf16.mxu0 0
  %773 = vmatpush2.bf16.msra.mxu0 0
  %774 = vmatprep.subr.bf16.mxu0 0
  %775 = vmatpush2.bf16.msra.mxu0 0
  %776 = vmatprep.subr.bf16.mxu0 0
  %777 = vmatpush2.bf16.msra.mxu0 0
  %778 = vmatprep.subr.bf16.mxu0 0
  %779 = vmatpush2.bf16.msra.mxu0 0
  %780 = vmatprep.subr.bf16.mxu0 0
  %781 = vmatpush2.bf16.msra.mxu0 0
  %782 = vmatprep.subr.bf16.mxu0 0
  %783 = vmatpush2.bf16.msra.mxu0 0
  %784 = vmatprep.subr.bf16.mxu0 0
  %785 = vmatpush2.bf16.msra.mxu0 0
  %786 = vmatprep.subr.bf16.mxu0 0
  %787 = vmatpush2.bf16.msra.mxu0 0
  %788 = vmatprep.mubr.bf16.mxu0 0
  %789 = vmatmul.mubr.bf16.gmra.mxu0 %v15
  %v790 = vpop.f32.mrf.mxu0
  %v791 = vadd.f32 0.0, %v790
  %v792 = vpop.f32.mrf.mxu0
  %v793 = vadd.f32 0.0, %v792
  %v794 = vpop.f32.mrf.mxu0
  %v795 = vpop.f32.mrf.mxu0
  %796 = vdwg.mxu0
  %797 = vmatprep.subr.bf16.mxu0 %v495
  %798 = vmatpush1.bf16.msra.mxu0 %v494
  %799 = vmatprep.subr.bf16.mxu0 %v483
  %800 = vmatpush1.bf16.msra.mxu0 %v482
  %801 = vmatprep.subr.bf16.mxu0 %v471
  %802 = vmatpush1.bf16.msra.mxu0 %v470
  %803 = vmatprep.subr.bf16.mxu0 %v459
  %804 = vmatpush1.bf16.msra.mxu0 %v458
  %805 = vmatprep.subr.bf16.mxu0 %v447
  %806 = vmatpush1.bf16.msra.mxu0 %v446
  %807 = vmatprep.subr.bf16.mxu0 %v435
  %808 = vmatpush1.bf16.msra.mxu0 %v434
  %809 = vmatprep.subr.bf16.mxu0 %v423
  %810 = vmatpush1.bf16.msra.mxu0 %v422
  %811 = vmatprep.subr.bf16.mxu0 %v411
  %812 = vmatpush1.bf16.msra.mxu0 %v410
  %813 = vmatprep.subr.bf16.mxu0 0
  %814 = vmatpush2.bf16.msra.mxu0 0
  %815 = vmatprep.subr.bf16.mxu0 0
  %816 = vmatpush2.bf16.msra.mxu0 0
  %817 = vmatprep.subr.bf16.mxu0 0
  %818 = vmatpush2.bf16.msra.mxu0 0
  %819 = vmatprep.subr.bf16.mxu0 0
  %820 = vmatpush2.bf16.msra.mxu0 0
  %821 = vmatprep.subr.bf16.mxu0 0
  %822 = vmatpush2.bf16.msra.mxu0 0
  %823 = vmatprep.subr.bf16.mxu0 0
  %824 = vmatpush2.bf16.msra.mxu0 0
  %825 = vmatprep.subr.bf16.mxu0 0
  %826 = vmatpush2.bf16.msra.mxu0 0
  %827 = vmatprep.subr.bf16.mxu0 0
  %828 = vmatpush2.bf16.msra.mxu0 0
  %829 = vmatprep.mubr.bf16.mxu0 0
  %830 = vmatmul.mubr.bf16.gmra.mxu0 %v15
  %v831 = vpop.f32.mrf.mxu0
  %v832 = vadd.f32 0.0, %v831
  %v833 = vpop.f32.mrf.mxu0
  %v834 = vadd.f32 0.0, %v833
  %v835 = vpop.f32.mrf.mxu0
  %v836 = vpop.f32.mrf.mxu0
  %837 = vdwg.mxu0
  %v838 = vmax.f32 %v627, %v629
  %v839 = vmax.f32 %v838, %v668
  %v840 = vmax.f32 %v839, %v670
  %v841 = vmax.f32 %v840, %v709
  %v842 = vmax.f32 %v841, %v711
  %v843 = vmax.f32 %v842, %v750
  %v844 = vmax.f32 %v843, %v752
  %v845 = vmax.f32 %v844, %v791
  %v846 = vmax.f32 %v845, %v793
  %v847 = vmax.f32 %v846, %v832
  %v848 = vmax.f32 %v847, %v834
  %v849 = vld [vmem:[%s2] sm:$0x1]
  %v851 = vlaneseq
  %v852 = vshrl.u32 %v851, 7
  %v853 = vsub.s32 0, %v852
  %v854 = vrot.slane %v849, %v853
  %v856 = vadd.f32 %v848, %v854
  %v857 = vmax.f32 %v856, 0.0
  %858 = vst [vmem:[%s3] sm:$0xff] %v857
  // Predicated region
  $region14: #{cnn_forward.1} parent=0 // pred_check
    _
  $region15: #{cnn_forward.1} parent=0 // pred_check_branch
    %860 = sbr.rel (0) target = $region17
  $region16: #{cnn_forward.1} parent=0 // pred_region
    _
  $region17: #{cnn_forward.1} parent=0 // pred_fallthru
    _
  // Predicated region
  $region18: #{cnn_forward.1} parent=0 // pred_check
    _
  $region19: #{cnn_forward.1} parent=0 // pred_check_branch
    %862 = sbr.rel (0) target = $region21
  $region20: #{cnn_forward.1} parent=0 // pred_region
    _
  $region21: #{cnn_forward.1} parent=0 // pred_fallthru
    _

</llo_original>
